<compile_context>
chip_gen: v7x
topology: tpu7x:2x2x1
jax: 0.10.0
libtpu: 0.0.40
codegen_flags: <defaults>
</compile_context>

<pallas_src>
import functools

import jax
import jax.numpy as jnp
from jax.experimental import pallas as pl
from jax.experimental.pallas import tpu as pltpu

_LANE = 128                           # lane width (last-dim granularity)
_H_CHUNK = 512                        # hidden-dim streaming chunk (multiple of 128)
_PREP_BT = 256                        # worst-case batch tile assumed at prepare time
_WS_BUDGET = 24 * 1024 * 1024         # target per-step VMEM working set
_VMEM_LIMIT_CAP = 56 * 1024 * 1024    # stay under v7x's 64 MiB physical VMEM per TC


def _round_up(n: int, m: int) -> int:
    return (n + m - 1) // m * m


def _cdiv(a: int, b: int) -> int:
    return (a + b - 1) // b


def _working_set_bytes(bt, i, th, cp, out_bytes):
    """Per-grid-step VMEM estimate (double-buffered streams + scratch + intermediate)."""
    return (2 * bt * i * 4            # x tile (f32), double-buffered
            + 2 * i * th * 2          # fc1 weight chunk (bf16)
            + 2 * th * 4              # fc1 bias chunk (f32)
            + 2 * th * cp * 2         # fc2 weight chunk (bf16)
            + 2 * cp * 4              # fc2 bias (f32)
            + 2 * bt * cp * out_bytes # output tile
            + bt * cp * 4             # f32 accumulator scratch
            + bt * th * 4)            # fc1 activation intermediate (f32)


def mlp_kernel(x_ref, w1_ref, b1_ref, w2_ref, b2_ref, o_ref, acc_ref):
    j = pl.program_id(1)  # hidden-chunk (reduction) axis

    @pl.when(j == 0)
    def _init():
        acc_ref[...] = jnp.zeros_like(acc_ref)

    # fc1 (one hidden chunk): cast the f32 activation tile to bf16 right at the MXU
    # operand; accumulate in f32 via preferred_element_type.
    h = jnp.dot(x_ref[...].astype(jnp.bfloat16), w1_ref[...],
                preferred_element_type=jnp.float32)
    # Bias add + ReLU on the VPU in f32 (v5e has no bf16 VPU path).
    h = jnp.maximum(h + b1_ref[...], 0.0)
    # Partial fc2: this hidden chunk's contribution, accumulated into f32 scratch.
    acc_ref[...] += jnp.dot(h.astype(jnp.bfloat16), w2_ref[...],
                            preferred_element_type=jnp.float32)

    @pl.when(j == pl.num_programs(1) - 1)
    def _finalize():
        o_ref[...] = (acc_ref[...] + b2_ref[...]).astype(o_ref.dtype)


def prepare_params(w1, b1, w2, b2):
    """One-time layout/pad/cast of PyTorch-layout Linear params (hoisted off the fwd path).

    w1: [H, I], b1: [H], w2: [C, H], b2: [C]   (torch nn.Linear layout)
    Returns:
      w1_t: [I, Hp] bf16, b1_r: [1, Hp] f32, w2_t: [Hp, Cp] bf16, b2_r: [1, Cp] f32
    Zero padding is inert for matmul / bias / ReLU and is sliced off by net_forward.
    """
    H, I = w1.shape
    C = w2.shape[0]
    Hp = _round_up(H, _LANE)
    Cp = _round_up(C, _LANE)
    # If the fully-resident working set would bust the VMEM budget, pad H up to a
    # multiple of _H_CHUNK so the forward pass streams the hidden dim in chunks that
    # divide Hp exactly (no partial - i.e. garbage - hidden blocks are ever read).
    if _working_set_bytes(_PREP_BT, I, Hp, Cp, 4) > _WS_BUDGET:
        Hp = _round_up(H, _H_CHUNK)
    w1_t = jnp.pad(w1.T, ((0, 0), (0, Hp - H))).astype(jnp.bfloat16)
    b1_r = jnp.pad(b1.reshape(1, -1), ((0, 0), (0, Hp - H))).astype(jnp.float32)
    w2_t = jnp.pad(w2.T, ((0, Hp - H), (0, Cp - C))).astype(jnp.bfloat16)
    b2_r = jnp.pad(b2.reshape(1, -1), ((0, 0), (0, Cp - C))).astype(jnp.float32)
    return w1_t, b1_r, w2_t, b2_r


@functools.partial(jax.jit, static_argnames=("num_classes", "block_b", "out_dtype"))
def net_forward(x, w1_t, b1, w2_t, b2, *, num_classes, block_b=256, out_dtype=None):
    """Forward pass of Net (fc1 -> ReLU -> fc2) using pre-prepared params.

    x: [B, I] activations (unpadded; cast to bf16 per-tile inside the kernel).
    w1_t/b1/w2_t/b2: outputs of prepare_params.
    Returns [B, num_classes].
    """
    out_dtype = x.dtype if out_dtype is None else jnp.dtype(out_dtype)
    B, I = x.shape
    Ip, Hp = w1_t.shape
    Cp = w2_t.shape[1]
    assert Ip == I, "w1_t first dim must equal x's feature dim (run prepare_params)"

    # Batch tile: multiple of 16 (bf16 packs 16 sublanes/vreg); ensure >=2 grid steps
    # along the parallel axis when B > 16 so v7x's two TensorCores can split the grid.
    if B <= 16:
        bt = _round_up(B, 8)
    else:
        bt = max(16, min(block_b, _round_up(_cdiv(B, 2), 16)))
    nb = _cdiv(B, bt)

    # Hidden-dim chunking (prepare_params guarantees Hp % _H_CHUNK == 0 whenever the
    # resident working set would exceed the VMEM budget).
    nh = Hp // _H_CHUNK if Hp % _H_CHUNK == 0 else 1
    th = Hp // nh

    out_bytes = jnp.dtype(out_dtype).itemsize
    ws = _working_set_bytes(bt, I, th, Cp, out_bytes)
    vmem_limit = int(min(_VMEM_LIMIT_CAP, max(32 * 1024 * 1024, ws + 16 * 1024 * 1024)))

    flops = 2 * B * (I * Hp + Hp * Cp)
    bytes_accessed = int(x.size * x.dtype.itemsize
                         + nb * (w1_t.size * 2 + w2_t.size * 2 + b1.size * 4 + b2.size * 4)
                         + B * Cp * out_bytes)

    out_padded = pl.pallas_call(
        mlp_kernel,
        out_shape=jax.ShapeDtypeStruct((B, Cp), out_dtype),
        grid=(nb, nh),
        in_specs=[
            pl.BlockSpec((bt, I), lambda i, j: (i, 0)),    # x tile (resident across H axis)
            pl.BlockSpec((I, th), lambda i, j: (0, j)),    # fc1 weight chunk
            pl.BlockSpec((1, th), lambda i, j: (0, j)),    # fc1 bias chunk
            pl.BlockSpec((th, Cp), lambda i, j: (j, 0)),   # fc2 weight chunk
            pl.BlockSpec((1, Cp), lambda i, j: (0, 0)),    # fc2 bias (resident)
        ],
        out_specs=pl.BlockSpec((bt, Cp), lambda i, j: (i, 0)),
        scratch_shapes=[pltpu.VMEM((bt, Cp), jnp.float32)],
        compiler_params=pltpu.CompilerParams(
            dimension_semantics=("parallel", "arbitrary"),
            vmem_limit_bytes=vmem_limit,
        ),
        cost_estimate=pl.CostEstimate(
            flops=flops, transcendentals=0, bytes_accessed=bytes_accessed),
    )(x, w1_t, b1, w2_t, b2)

    return out_padded[:, :num_classes]


def init_params(key, input_size, hidden_size, num_classes, dtype=jnp.float32):
    """PyTorch-layout params with nn.Linear default init U(-1/sqrt(fan_in), +)."""
    k1, k2, k3, k4 = jax.random.split(key, 4)
    bound1 = 1.0 / (input_size ** 0.5)
    bound2 = 1.0 / (hidden_size ** 0.5)
    w1 = jax.random.uniform(k1, (hidden_size, input_size), dtype, -bound1, bound1)
    b1 = jax.random.uniform(k2, (hidden_size,), dtype, -bound1, bound1)
    w2 = jax.random.uniform(k3, (num_classes, hidden_size), dtype, -bound2, bound2)
    b2 = jax.random.uniform(k4, (num_classes,), dtype, -bound2, bound2)
    return w1, b1, w2, b2


if __name__ == "__main__":
    batch, input_size, hidden_size, num_classes = 8, 32, 64, 16

    key = jax.random.PRNGKey(0)
    kx, kp = jax.random.split(key)
    x = jax.random.normal(kx, (batch, input_size), jnp.float32)
    w1, b1, w2, b2 = init_params(kp, input_size, hidden_size, num_classes)

    # One-time weight preparation (pad + transpose + bf16 cast) — off the forward path.
    prepared = prepare_params(w1, b1, w2, b2)

    out = jax.block_until_ready(
        net_forward(x, *prepared, num_classes=num_classes))

    # Plain-JAX f32 reference (same math as the PyTorch forward); tolerance loosened
    # for bf16 MXU operands with f32 accumulation.
    ref = jnp.maximum(x @ w1.T + b1, 0.0) @ w2.T + b2
    assert out.shape == (batch, num_classes)
    assert jnp.allclose(out, ref, atol=5e-2, rtol=5e-2), float(jnp.max(jnp.abs(out - ref)))

    print("KERNEL_OK")
</pallas_src>

<mosaic_0001>
module attributes {stable_mosaic.version = 11 : i64} {
  func.func @mlp_kernel(%arg0: i32, %arg1: i32, %arg2: memref<8x32xf32, #tpu.memory_space<vmem>>, %arg3: memref<32x128xbf16, #tpu.memory_space<vmem>>, %arg4: memref<1x128xf32, #tpu.memory_space<vmem>>, %arg5: memref<128x128xbf16, #tpu.memory_space<vmem>>, %arg6: memref<1x128xf32, #tpu.memory_space<vmem>>, %arg7: memref<8x128xf32, #tpu.memory_space<vmem>>, %arg8: memref<8x128xf32, #tpu.memory_space<vmem>>) attributes {dimension_semantics = [#tpu.dimension_semantics<parallel>, #tpu.dimension_semantics<arbitrary>], iteration_bounds = array<i64: 1, 1>, scalar_prefetch = 0 : i64, scratch_operands = 1 : i64, tpu.core_type = #tpu.core_type<tc>, window_params = [{transform_indices = @transform_0, window_bounds = array<i64: 8, 32>}, {transform_indices = @transform_1, window_bounds = array<i64: 32, 128>}, {transform_indices = @transform_2, window_bounds = array<i64: 1, 128>}, {transform_indices = @transform_3, window_bounds = array<i64: 128, 128>}, {pipeline_mode = #tpu.pipeline_mode<synchronous>, transform_indices = @transform_4, window_bounds = array<i64: 1, 128>}, {transform_indices = @transform_5, window_bounds = array<i64: 8, 128>}]} {
    %c0_i32 = arith.constant 0 : i32
    %0 = arith.cmpi eq, %arg1, %c0_i32 : i32
    %1 = arith.extui %0 : i1 to i32
    %c0_i32_0 = arith.constant 0 : i32
    %2 = arith.cmpi ne, %1, %c0_i32_0 : i32
    scf.if %2 {
      %cst_16 = arith.constant 0.000000e+00 : f32
      %21 = vector.broadcast %cst_16 : f32 to vector<8x128xf32>
      %c0_17 = arith.constant 0 : index
      %c0_18 = arith.constant 0 : index
      %22 = vector.load %arg8[%c0_17, %c0_18] : memref<8x128xf32, #tpu.memory_space<vmem>>, vector<8x128xf32>
      tpu.vector_store %arg8[%c0_17, %c0_18], %21 {strides = array<i32>} : memref<8x128xf32, #tpu.memory_space<vmem>>, vector<8x128xf32>,
    } else {
    }
    %c0 = arith.constant 0 : index
    %c0_1 = arith.constant 0 : index
    %3 = vector.load %arg2[%c0, %c0_1] : memref<8x32xf32, #tpu.memory_space<vmem>>, vector<8x32xf32>
    %4 = arith.truncf %3 : vector<8x32xf32> to vector<8x32xbf16>
    %c0_2 = arith.constant 0 : index
    %c0_3 = arith.constant 0 : index
    %5 = vector.load %arg3[%c0_2, %c0_3] : memref<32x128xbf16, #tpu.memory_space<vmem>>, vector<32x128xbf16>
    %cst = arith.constant dense<0.000000e+00> : vector<8x128xf32>
    %6 = tpu.matmul %4, %5, %cst {dimension_numbers = #tpu.dot_dimension_numbers<[1], [0], [0], [1], [0, 0, 1, 1], [], []>} : vector<8x32xbf16>, vector<32x128xbf16>, vector<8x128xf32> -> vector<8x128xf32>
    %c0_4 = arith.constant 0 : index
    %c0_5 = arith.constant 0 : index
    %7 = vector.load %arg4[%c0_4, %c0_5] : memref<1x128xf32, #tpu.memory_space<vmem>>, vector<1x128xf32>
    %8 = vector.broadcast %7 : vector<1x128xf32> to vector<8x128xf32>
    %9 = arith.addf %6, %8 : vector<8x128xf32>
    %cst_6 = arith.constant 0.000000e+00 : f32
    %10 = vector.broadcast %cst_6 : f32 to vector<8x128xf32>
    %11 = arith.maximumf %9, %10 : vector<8x128xf32>
    %c0_7 = arith.constant 0 : index
    %c0_8 = arith.constant 0 : index
    %12 = vector.load %arg8[%c0_7, %c0_8] : memref<8x128xf32, #tpu.memory_space<vmem>>, vector<8x128xf32>
    %13 = arith.truncf %11 : vector<8x128xf32> to vector<8x128xbf16>
    %c0_9 = arith.constant 0 : index
    %c0_10 = arith.constant 0 : index
    %14 = vector.load %arg5[%c0_9, %c0_10] : memref<128x128xbf16, #tpu.memory_space<vmem>>, vector<128x128xbf16>
    %cst_11 = arith.constant dense<0.000000e+00> : vector<8x128xf32>
    %15 = tpu.matmul %13, %14, %cst_11 {dimension_numbers = #tpu.dot_dimension_numbers<[1], [0], [0], [1], [0, 0, 1, 1], [], []>} : vector<8x128xbf16>, vector<128x128xbf16>, vector<8x128xf32> -> vector<8x128xf32>
    %16 = arith.addf %12, %15 : vector<8x128xf32>
    %c0_12 = arith.constant 0 : index
    %c0_13 = arith.constant 0 : index
    %17 = vector.load %arg8[%c0_12, %c0_13] : memref<8x128xf32, #tpu.memory_space<vmem>>, vector<8x128xf32>
    tpu.vector_store %arg8[%c0_12, %c0_13], %16 {strides = array<i32>} : memref<8x128xf32, #tpu.memory_space<vmem>>, vector<8x128xf32>,
    %c0_i32_14 = arith.constant 0 : i32
    %18 = arith.cmpi eq, %arg1, %c0_i32_14 : i32
    %19 = arith.extui %18 : i1 to i32
    %c0_i32_15 = arith.constant 0 : i32
    %20 = arith.cmpi ne, %19, %c0_i32_15 : i32
    scf.if %20 {
      %c0_16 = arith.constant 0 : index
      %c0_17 = arith.constant 0 : index
      %21 = vector.load %arg8[%c0_16, %c0_17] : memref<8x128xf32, #tpu.memory_space<vmem>>, vector<8x128xf32>
      %c0_18 = arith.constant 0 : index
      %c0_19 = arith.constant 0 : index
      %22 = vector.load %arg6[%c0_18, %c0_19] : memref<1x128xf32, #tpu.memory_space<vmem>>, vector<1x128xf32>
      %23 = vector.broadcast %22 : vector<1x128xf32> to vector<8x128xf32>
      %24 = arith.addf %21, %23 : vector<8x128xf32>
      %c0_20 = arith.constant 0 : index
      %c0_21 = arith.constant 0 : index
      %25 = vector.load %arg7[%c0_20, %c0_21] : memref<8x128xf32, #tpu.memory_space<vmem>>, vector<8x128xf32>
      tpu.vector_store %arg7[%c0_20, %c0_21], %24 {strides = array<i32>} : memref<8x128xf32, #tpu.memory_space<vmem>>, vector<8x128xf32>,
    } else {
    }
    return
  }
  func.func @transform_0(%arg0: i32, %arg1: i32) -> (i32, i32) {
    %c0_i32 = arith.constant 0 : i32
    %c0_i32_0 = arith.constant 0 : i32
    return %arg0, %c0_i32 : i32, i32
  }
  func.func @transform_1(%arg0: i32, %arg1: i32) -> (i32, i32) {
    %c0_i32 = arith.constant 0 : i32
    %c0_i32_0 = arith.constant 0 : i32
    return %c0_i32, %arg1 : i32, i32
  }
  func.func @transform_2(%arg0: i32, %arg1: i32) -> (i32, i32) {
    %c0_i32 = arith.constant 0 : i32
    %c0_i32_0 = arith.constant 0 : i32
    return %c0_i32, %arg1 : i32, i32
  }
  func.func @transform_3(%arg0: i32, %arg1: i32) -> (i32, i32) {
    %c0_i32 = arith.constant 0 : i32
    %c0_i32_0 = arith.constant 0 : i32
    return %arg1, %c0_i32 : i32, i32
  }
  func.func @transform_4(%arg0: i32, %arg1: i32) -> (i32, i32) {
    %c0_i32 = arith.constant 0 : i32
    %c0_i32_0 = arith.constant 0 : i32
    %c0_i32_1 = arith.constant 0 : i32
    return %c0_i32, %c0_i32_0 : i32, i32
  }
  func.func @transform_5(%arg0: i32, %arg1: i32) -> (i32, i32) {
    %c0_i32 = arith.constant 0 : i32
    %c0_i32_0 = arith.constant 0 : i32
    return %arg0, %c0_i32 : i32, i32
  }
}

</mosaic_0001>

<llo_original>
// kernel: net_forward.1
$region0: #{net_forward.1}
  #allocation0 [shape = 'u32[]', space=smem, size = 0x4, offset = 0x4, fixed_abs, tag = 'smem constant byte address 0x4 - core index']
  #allocation1 [shape = 'u32[144,128]{1,0:T(1,128)}', space=vmem, size = 0x12000, scoped, tag = 'internal scratch']
  #allocation2 [shape = 'f32[8,128]{1,0:T(8,128)}', space=vmem, size = 0x1000, scoped, tag = 'scratch operand']
  %s0 = inlined_call_operand.hbm [shape: f32[8,32], index: 0, kind: input, shape index: {}]
  %s1 = inlined_call_operand.hbm [shape: bf16[32,128], index: 1, kind: input, shape index: {}]
  %s2 = inlined_call_operand.vmem [shape: f32[1,128], index: 2, kind: input, shape index: {}]
  %s3 = inlined_call_operand.hbm [shape: bf16[128,128], index: 3, kind: input, shape index: {}]
  %s4 = inlined_call_operand.vmem [shape: f32[1,128], index: 4, kind: input, shape index: {}]
  %s5 = inlined_call_operand.hbm [shape: f32[8,128], index: 5, kind: output, shape index: {}]
  %s6 = sld [smem:[#allocation0]]
  $region50: #{net_forward.1} parent=0
    _
  %s8 = ssub.s32 1, %s6
  %s9 = scalar_select 0, %s8, %s6
  $region1: #{net_forward.1} parent=0
    #allocation3 [shape = 'u8[4096]{0}', space=vmem, size = 0x1000, scoped, tag = 'input window, operand 0, single buffered']
    #allocation4 [shape = 's32[1]{0}', space=sflag, size = 0x4, scoped, tag = 'scoped memory for net_forward.1']
    #allocation5 [shape = 's32[1]{0}', space=sflag, size = 0x4, scoped, tag = 'scoped memory for net_forward.1']
    #allocation6 [shape = 'u8[8192]{0}', space=vmem, size = 0x2000, scoped, tag = 'input window, operand 1, single buffered']
    #allocation7 [shape = 's32[1]{0}', space=sflag, size = 0x4, scoped, tag = 'scoped memory for net_forward.1']
    #allocation8 [shape = 'u8[32768]{0}', space=vmem, size = 0x8000, scoped, tag = 'input window, operand 3, single buffered']
    #allocation9 [shape = 'u8[4096]{0}', space=vmem, size = 0x1000, scoped, tag = 'output window, operand 0, single buffered']
    %10 = vsyncpa [#allocation4], 0
    %11 = vsyncpa [#allocation7], 0
    %12 = vsyncpa [#allocation5], 0
    // Predicated region
    $region2: #{net_forward.1} parent=1 // pred_check
      _
    $region3: #{net_forward.1} parent=1 // pred_check_branch
      %14 = sbr.rel (0) target = $region5
    $region4: #{net_forward.1} parent=1 // pred_region
      %s16 = ssub.s32 128, 128
      %17 = vsyncadd [#allocation4], %s16
      %s19 = sshll.u32 [#allocation3], 4
      %s20 = int_to_ptr.vmem [resolvable:$true] %s19
      %22 = dma.hbm_to_vmem [thread:$0]  %s0, 128, %s20, [#allocation4]
    $region5: #{net_forward.1} parent=1 // pred_fallthru
      _
    // Predicated region
    $region6: #{net_forward.1} parent=1 // pred_check
      _
    $region7: #{net_forward.1} parent=1 // pred_check_branch
      %24 = sbr.rel (0) target = $region9
    $region8: #{net_forward.1} parent=1 // pred_region
      %s26 = ssub.s32 256, 256
      %27 = vsyncadd [#allocation7], %s26
      %s28 = sshll.u32 [#allocation6], 4
      %s29 = int_to_ptr.vmem [resolvable:$true] %s28
      %34 = dma.hbm_to_vmem [thread:$0]  %s1, 256, %s29, [#allocation7], 64, 64, 4
    $region9: #{net_forward.1} parent=1 // pred_fallthru
      _
    // Predicated region
    $region10: #{net_forward.1} parent=1 // pred_check
      _
    $region11: #{net_forward.1} parent=1 // pred_check_branch
      %36 = sbr.rel (0) target = $region13
    $region12: #{net_forward.1} parent=1 // pred_region
      _
    $region13: #{net_forward.1} parent=1 // pred_fallthru
      _
    // Predicated region
    $region14: #{net_forward.1} parent=1 // pred_check
      _
    $region15: #{net_forward.1} parent=1 // pred_check_branch
      %38 = sbr.rel (0) target = $region17
    $region16: #{net_forward.1} parent=1 // pred_region
      %s40 = ssub.s32 1024, 1024
      %41 = vsyncadd [#allocation7], %s40
      %s42 = sshll.u32 [#allocation8], 4
      %s43 = int_to_ptr.vmem [resolvable:$true] %s42
      %48 = dma.hbm_to_vmem [thread:$0]  %s3, 1024, %s43, [#allocation7], 64, 64, 4
    $region17: #{net_forward.1} parent=1 // pred_fallthru
      _
    // Predicated region
    $region18: #{net_forward.1} parent=1 // pred_check
      _
    $region19: #{net_forward.1} parent=1 // pred_check_branch
      %50 = sbr.rel (0) target = $region21
    $region20: #{net_forward.1} parent=1 // pred_region
      _
    $region21: #{net_forward.1} parent=1 // pred_fallthru
      _
    // Predicated region
    $region22: #{net_forward.1} parent=1 // pred_check
      _
    $region23: #{net_forward.1} parent=1 // pred_check_branch
      %52 = sbr.rel (0) target = $region25
    $region24: #{net_forward.1} parent=1 // pred_region
      %53 = dma.done [#allocation4], 128
    $region25: #{net_forward.1} parent=1 // pred_fallthru
      _
    // Predicated region
    $region26: #{net_forward.1} parent=1 // pred_check
      _
    $region27: #{net_forward.1} parent=1 // pred_check_branch
      %55 = sbr.rel (0) target = $region29
    $region28: #{net_forward.1} parent=1 // pred_region
      %56 = dma.done [#allocation7], 256
    $region29: #{net_forward.1} parent=1 // pred_fallthru
      _
    // Predicated region
    $region30: #{net_forward.1} parent=1 // pred_check
      _
    $region31: #{net_forward.1} parent=1 // pred_check_branch
      %58 = sbr.rel (0) target = $region33
    $region32: #{net_forward.1} parent=1 // pred_region
      %59 = dma.done [#allocation7], 1024
    $region33: #{net_forward.1} parent=1 // pred_fallthru
      _
    %p61 = scmp.eq.s32.totalorder 0, 0
    // Predicated region
    $region34: #{net_forward.1} parent=1 // pred_check
      %p62 = pneg %p61
    $region35: #{net_forward.1} parent=1 // pred_check_branch
      %64 = sbr.rel (%p62) target = $region37
    $region36: #{net_forward.1} parent=1 // pred_region
      %65 = vst [vmem:[#allocation2] sm:$0xff] 0.0
    $region37: #{net_forward.1} parent=1 // pred_fallthru
      _
    %v66 = vld [vmem:[#allocation3] sm:$0xff]
    %v67 = vpack.c.bf16 %v66, %v66
    %v68 = vld [vmem:[#allocation6] sm:$0xf]
    %v69 = vld [vmem:[#allocation6 + $0x4] sm:$0xf]
    %v70 = vld [vmem:[#allocation6 + $0x8] sm:$0xf]
    %v71 = vld [vmem:[#allocation6 + $0xc] sm:$0xf]
    %v72 = vld [vmem:[%s2] sm:$0x1]
    %v74 = vlaneseq
    %v75 = vshrl.u32 %v74, 7
    %v76 = vsub.s32 0, %v75
    %v77 = vrot.slane %v72, %v76
    %v83 = vunpack.c.l.b16 %v68
    %v84 = vunpack.c.l.b16 %v69
    %v85 = vunpack.c.l.b16 %v70
    %v86 = vunpack.c.l.b16 %v71
    %v87 = vpack.c.b16 %v84, %v83
    %v88 = vpack.c.b16 %v86, %v85
    %vm91 = vcmask 261120
    %v93 = vsel %vm91, %v67, 0
    %95 = vmatprep.subr.bf16.mxu0 0
    %96 = vmatpush1.bf16.msra.mxu0 %v87
    %97 = vmatprep.subr.bf16.mxu0 0
    %98 = vmatpush1.bf16.msra.mxu0 %v88
    %99 = vmatprep.subr.bf16.mxu0 0
    %100 = vmatpush1.bf16.msra.mxu0 0
    %101 = vmatprep.subr.bf16.mxu0 0
    %102 = vmatpush1.bf16.msra.mxu0 0
    %103 = vmatprep.subr.bf16.mxu0 0
    %104 = vmatpush1.bf16.msra.mxu0 0
    %105 = vmatprep.subr.bf16.mxu0 0
    %106 = vmatpush1.bf16.msra.mxu0 0
    %107 = vmatprep.subr.bf16.mxu0 0
    %108 = vmatpush1.bf16.msra.mxu0 0
    %109 = vmatprep.subr.bf16.mxu0 0
    %110 = vmatpush1.bf16.msra.mxu0 0
    %111 = vmatprep.subr.bf16.mxu0 0
    %112 = vmatpush1.bf16.msra.mxu0 0
    %113 = vmatprep.subr.bf16.mxu0 0
    %114 = vmatpush1.bf16.msra.mxu0 0
    %115 = vmatprep.subr.bf16.mxu0 0
    %116 = vmatpush1.bf16.msra.mxu0 0
    %117 = vmatprep.subr.bf16.mxu0 0
    %118 = vmatpush1.bf16.msra.mxu0 0
    %119 = vmatprep.subr.bf16.mxu0 0
    %120 = vmatpush1.bf16.msra.mxu0 0
    %121 = vmatprep.subr.bf16.mxu0 0
    %122 = vmatpush1.bf16.msra.mxu0 0
    %123 = vmatprep.subr.bf16.mxu0 0
    %124 = vmatpush1.bf16.msra.mxu0 0
    %125 = vmatprep.subr.bf16.mxu0 0
    %126 = vmatpush1.bf16.msra.mxu0 0
    %127 = vmatprep.mubr.bf16.mxu0 0
    %128 = vmatmul.mubr.bf16.gmra.mrb[0].mxu0 %v93
    %v129 = vpop.f32.mrb[0].mxu0
    %v130 = vadd.f32 %v77, %v129
    %v131 = vpop.f32.mrb[0].mxu0
    %v132 = vpop.f32.mrb[0].mxu0
    %v133 = vpop.f32.mrb[0].mxu0
    %134 = vdwg.mxu0
    %v135 = vmax.f32 %v130, 0.0
    %v136 = vld [vmem:[#allocation2] sm:$0xff]
    %v137 = vpack.c.bf16 %v135, %v135
    %v138 = vld [vmem:[#allocation8] sm:$0xf]
    %v139 = vld [vmem:[#allocation8 + $0x4] sm:$0xf]
    %v140 = vld [vmem:[#allocation8 + $0x8] sm:$0xf]
    %v141 = vld [vmem:[#allocation8 + $0xc] sm:$0xf]
    %v142 = vld [vmem:[#allocation8 + $0x10] sm:$0xf]
    %v143 = vld [vmem:[#allocation8 + $0x14] sm:$0xf]
    %v144 = vld [vmem:[#allocation8 + $0x18] sm:$0xf]
    %v145 = vld [vmem:[#allocation8 + $0x1c] sm:$0xf]
    %v146 = vld [vmem:[#allocation8 + $0x20] sm:$0xf]
    %v147 = vld [vmem:[#allocation8 + $0x24] sm:$0xf]
    %v148 = vld [vmem:[#allocation8 + $0x28] sm:$0xf]
    %v149 = vld [vmem:[#allocation8 + $0x2c] sm:$0xf]
    %v150 = vld [vmem:[#allocation8 + $0x30] sm:$0xf]
    %v151 = vld [vmem:[#allocation8 + $0x34] sm:$0xf]
    %v152 = vld [vmem:[#allocation8 + $0x38] sm:$0xf]
    %v153 = vld [vmem:[#allocation8 + $0x3c] sm:$0xf]
    %v170 = vunpack.c.l.b16 %v138
    %v171 = vunpack.c.l.b16 %v139
    %v172 = vunpack.c.l.b16 %v140
    %v173 = vunpack.c.l.b16 %v141
    %v174 = vunpack.c.l.b16 %v142
    %v175 = vunpack.c.l.b16 %v143
    %v176 = vunpack.c.l.b16 %v144
    %v177 = vunpack.c.l.b16 %v145
    %v178 = vunpack.c.l.b16 %v146
    %v179 = vunpack.c.l.b16 %v147
    %v180 = vunpack.c.l.b16 %v148
    %v181 = vunpack.c.l.b16 %v149
    %v182 = vunpack.c.l.b16 %v150
    %v183 = vunpack.c.l.b16 %v151
    %v184 = vunpack.c.l.b16 %v152
    %v185 = vunpack.c.l.b16 %v153
    %v186 = vpack.c.b16 %v171, %v170
    %v187 = vpack.c.b16 %v173, %v172
    %v188 = vpack.c.b16 %v175, %v174
    %v189 = vpack.c.b16 %v177, %v176
    %v190 = vpack.c.b16 %v179, %v178
    %v191 = vpack.c.b16 %v181, %v180
    %v192 = vpack.c.b16 %v183, %v182
    %v193 = vpack.c.b16 %v185, %v184
    %202 = vmatprep.subr.bf16.mxu0 0
    %203 = vmatpush1.bf16.msra.mxu0 %v186
    %204 = vmatprep.subr.bf16.mxu0 0
    %205 = vmatpush1.bf16.msra.mxu0 %v187
    %206 = vmatprep.subr.bf16.mxu0 0
    %207 = vmatpush1.bf16.msra.mxu0 %v188
    %208 = vmatprep.subr.bf16.mxu0 0
    %209 = vmatpush1.bf16.msra.mxu0 %v189
    %210 = vmatprep.subr.bf16.mxu0 0
    %211 = vmatpush1.bf16.msra.mxu0 %v190
    %212 = vmatprep.subr.bf16.mxu0 0
    %213 = vmatpush1.bf16.msra.mxu0 %v191
    %214 = vmatprep.subr.bf16.mxu0 0
    %215 = vmatpush1.bf16.msra.mxu0 %v192
    %216 = vmatprep.subr.bf16.mxu0 0
    %217 = vmatpush1.bf16.msra.mxu0 %v193
    %218 = vmatprep.subr.bf16.mxu0 0
    %219 = vmatpush1.bf16.msra.mxu0 0
    %220 = vmatprep.subr.bf16.mxu0 0
    %221 = vmatpush1.bf16.msra.mxu0 0
    %222 = vmatprep.subr.bf16.mxu0 0
    %223 = vmatpush1.bf16.msra.mxu0 0
    %224 = vmatprep.subr.bf16.mxu0 0
    %225 = vmatpush1.bf16.msra.mxu0 0
    %226 = vmatprep.subr.bf16.mxu0 0
    %227 = vmatpush1.bf16.msra.mxu0 0
    %228 = vmatprep.subr.bf16.mxu0 0
    %229 = vmatpush1.bf16.msra.mxu0 0
    %230 = vmatprep.subr.bf16.mxu0 0
    %231 = vmatpush1.bf16.msra.mxu0 0
    %232 = vmatprep.subr.bf16.mxu0 0
    %233 = vmatpush1.bf16.msra.mxu0 0
    %234 = vmatprep.mubr.bf16.mxu0 0
    %235 = vmatmul.mubr.bf16.gmra.mrb[0].mxu0 %v137
    %v236 = vpop.f32.mrb[0].mxu0
    %v237 = vadd.f32 0.0, %v236
    %v238 = vpop.f32.mrb[0].mxu0
    %v239 = vpop.f32.mrb[0].mxu0
    %v240 = vpop.f32.mrb[0].mxu0
    %241 = vdwg.mxu0
    %v242 = vadd.f32 %v136, %v237
    %243 = vst [vmem:[#allocation2] sm:$0xff] %v242
    // Predicated region
    $region38: #{net_forward.1} parent=1 // pred_check
      %p244 = pneg %p61
    $region39: #{net_forward.1} parent=1 // pred_check_branch
      %246 = sbr.rel (%p244) target = $region41
    $region40: #{net_forward.1} parent=1 // pred_region
      %v247 = vld [vmem:[#allocation2] sm:$0xff]
      %v248 = vld [vmem:[%s4] sm:$0x1]
      %v250 = vlaneseq
      %v251 = vshrl.u32 %v250, 7
      %v252 = vsub.s32 0, %v251
      %v253 = vrot.slane %v248, %v252
      %v255 = vadd.f32 %v247, %v253
      %256 = vst [vmem:[#allocation9] sm:$0xff] %v255
    $region41: #{net_forward.1} parent=1 // pred_fallthru
      _
    // Predicated region
    $region42: #{net_forward.1} parent=1 // pred_check
      _
    $region43: #{net_forward.1} parent=1 // pred_check_branch
      %258 = sbr.rel (0) target = $region45
    $region44: #{net_forward.1} parent=1 // pred_region
      %s260 = ssub.s32 128, 128
      %261 = vsyncadd [#allocation5], %s260
      %s263 = sshll.u32 [#allocation9], 4
      %s264 = int_to_ptr.vmem [resolvable:$true] %s263
      %266 = dma.vmem_to_hbm [thread:$0]  %s264, 128, %s5, [#allocation5]
    $region45: #{net_forward.1} parent=1 // pred_fallthru
      _
    // Predicated region
    $region46: #{net_forward.1} parent=1 // pred_check
      _
    $region47: #{net_forward.1} parent=1 // pred_check_branch
      %268 = sbr.rel (0) target = $region49
    $region48: #{net_forward.1} parent=1 // pred_region
      %269 = dma.done [#allocation5], 128
    $region49: #{net_forward.1} parent=1 // pred_fallthru
      _
    %270 = vsyncpa [#allocation4], 1
    %271 = vsyncpa [#allocation7], 1
    %272 = vsyncpa [#allocation5], 1

</llo_original>
